<compile_context>
chip_gen: v7x
topology: tpu7x:2x2x1
jax: 0.10.0
libtpu: 0.0.40
codegen_flags: <defaults>
</compile_context>

<pallas_src>
import jax
import jax.numpy as jnp
from jax import lax
from jax.experimental import pallas as pl
from jax.experimental.pallas import tpu as pltpu

_LANES = 128
_SUBLANES = 8
_TARGET_TILE_BYTES = 2 << 20     # ~2 MiB of native-dtype logits HBM bytes per grid step
_MAX_ROW_TILE = 8192             # hard cap on rows per tile (multiple of 8)


def _loss_kernel(logits_ref, labels_ref, out_ref, acc_ref):
    i = pl.program_id(1)             # reduction (row-block) axis

    @pl.when(i == 0)
    def _init():
        acc_ref[...] = jnp.zeros_like(acc_ref)

    labels = labels_ref[...]                       # (tm, 1) int32, -1 = ignore/pad
    logits = logits_ref[...].astype(jnp.float32)   # (tm, C), upcast at load
    tm, c = logits.shape

    col = lax.broadcasted_iota(jnp.int32, (tm, c), 1)

    # Row max + first-occurrence argmax mask while the upcast logits are live.
    m = jnp.max(logits, axis=-1, keepdims=True)                       # (tm, 1)
    is_max = logits == m                                              # (tm, C) bool
    shifted = logits - m                                              # logits dies here

    # Numerically-stable pieces; sum_exp >= 1 because the max contributes exp(0).
    sum_exp = jnp.sum(jnp.exp(shifted), axis=-1, keepdims=True)       # (tm, 1)

    onehot = col == labels
    tgt_shift = jnp.sum(jnp.where(onehot, shifted, 0.0), axis=-1, keepdims=True)

    valid = labels != -1                                              # ignore_index
    # lse - tgt = (m + log(sum_exp)) - (m + tgt_shift) = log(sum_exp) - tgt_shift
    row_loss = jnp.where(valid, jnp.log(sum_exp) - tgt_shift, 0.0)    # (tm, 1)

    # First-occurrence argmax (matches torch.argmax / jnp.argmax semantics).
    argmax = jnp.min(jnp.where(is_max, col, c), axis=-1, keepdims=True)
    correct = (argmax == labels).astype(jnp.float32)                  # (tm, 1)

    # Per-tile scalars via cheap sublane reductions of the (tm, 1) columns.
    tile_loss = jnp.sum(row_loss, axis=0, keepdims=True)              # (1, 1)
    tile_valid = jnp.sum(valid.astype(jnp.float32), axis=0, keepdims=True)
    tile_correct = jnp.sum(correct, axis=0, keepdims=True)

    # Lane-dense accumulation: one aligned (1, 8, 128) vreg RMW per step.
    # Lanes 0/1/2 carry loss/valid/correct; the epilogue reads sublane 0 only.
    lane = lax.broadcasted_iota(jnp.int32, (1, _SUBLANES, _LANES), 2)
    partial = (jnp.where(lane == 0, tile_loss, 0.0)
               + jnp.where(lane == 1, tile_valid, 0.0)
               + jnp.where(lane == 2, tile_correct, 0.0))
    acc_ref[...] += partial

    # Write the (lane-dense) output block exactly once per core slice.
    @pl.when(i == pl.num_programs(1) - 1)
    def _finalize():
        out_ref[...] = acc_ref[...]


def _tpu_params():
    """(physical VMEM bytes per core, #TensorCores for the parallel split)."""
    vmem = 128 << 20
    cores = 1
    try:
        vmem = int(pltpu.get_tpu_info().vmem_capacity_bytes)
    except Exception:
        pass
    try:
        kind = jax.devices()[0].device_kind.lower()
        # Dual-TensorCore ("megacore") chips: v4, v5p, v7x. Single-TC v5e/v6e
        # get cores=1 so no duplicated clamped block / extra output row.
        if ("v4" in kind) or ("v5p" in kind) or ("v7" in kind) or ("7x" in kind):
            cores = 2
    except Exception:
        pass
    return vmem, cores


def _pick_row_tile(n, c, itemsize, vmem_budget):
    """Largest multiple-of-8 row tile that (a) moves >=~2 MiB of native-dtype
    HBM bytes per grid step and (b) keeps the double-buffered input tile plus
    ~8 f32 (tm, C) intermediates inside the scoped VMEM budget."""
    tm_hbm = _TARGET_TILE_BYTES // max(1, c * itemsize)
    per_row = 2 * c * itemsize + 8 * c * 4
    tm_vmem = (vmem_budget - (2 << 20)) // max(1, per_row)
    tm = int(min(max(tm_hbm, _SUBLANES), max(tm_vmem, _SUBLANES), _MAX_ROW_TILE))
    tm -= tm % _SUBLANES
    tm = max(_SUBLANES, tm)
    n_up = ((n + _SUBLANES - 1) // _SUBLANES) * _SUBLANES
    return max(_SUBLANES, min(tm, n_up))


def _ce_loss_and_acc(logits, labels):
    n, c = logits.shape
    itemsize = jnp.dtype(logits.dtype).itemsize

    vmem_cap, num_tc = _tpu_params()
    # <= half of physical VMEM: ~32 MiB on v7x (64 MiB/core), up to 64 MiB on v5e/v6e.
    vmem_budget = int(min(vmem_cap // 2, 64 << 20))

    tm = _pick_row_tile(n, c, itemsize, vmem_budget)
    nb = -(-n // tm)                     # real row blocks
    g = num_tc if nb >= num_tc else 1    # only split when there is work to split
    inner = -(-nb // g)                  # row blocks per core slice
    padded_rows = g * inner * tm

    # Labels are tiny: pad with -1 so tail rows / duplicated clamped blocks
    # contribute nothing. Logits stay un-padded in their native dtype; grid
    # positions past the last real block are clamped onto it.
    labels2d = labels.reshape(n, 1).astype(jnp.int32)
    labels2d = jnp.pad(labels2d, ((0, padded_rows - n), (0, 0)), constant_values=-1)

    in_tile = tm * c * itemsize
    f32_tile = tm * c * 4
    need = 2 * in_tile + 8 * f32_tile + (2 << 20)
    vmem_limit = int(min(vmem_budget, max(need, 16 << 20)))
    if need > vmem_limit:
        # Huge-C fallback: even tm=8 exceeds the budget; request what we need.
        # TODO(synk): replace with the class-dim online-logsumexp grid axis.
        vmem_limit = int(need)

    cost = pl.CostEstimate(
        flops=8 * n * c,
        transcendentals=n * c,
        bytes_accessed=n * c * itemsize + padded_rows * 4 + g * _SUBLANES * _LANES * 4,
    )

    sums = pl.pallas_call(
        _loss_kernel,
        out_shape=jax.ShapeDtypeStruct((g, _SUBLANES, _LANES), jnp.float32),
        grid_spec=pltpu.PrefetchScalarGridSpec(
            num_scalar_prefetch=0,
            grid=(g, inner),
            in_specs=[
                # Clamp so no fully-out-of-bounds logits block is ever requested.
                pl.BlockSpec((tm, c),
                             lambda gi, i: (jnp.minimum(gi * inner + i, nb - 1), 0)),
                pl.BlockSpec((tm, 1), lambda gi, i: (gi * inner + i, 0)),
            ],
            out_specs=pl.BlockSpec((1, _SUBLANES, _LANES), lambda gi, i: (gi, 0, 0)),
            scratch_shapes=[pltpu.VMEM((1, _SUBLANES, _LANES), jnp.float32)],
        ),
        compiler_params=pltpu.CompilerParams(
            dimension_semantics=("parallel", "arbitrary"),
            vmem_limit_bytes=vmem_limit,
        ),
        cost_estimate=cost,
    )(logits, labels2d)

    totals = jnp.sum(sums[:, 0, :3], axis=0)   # [sum_loss, n_valid, n_correct]
    # NOTE: if every label is -1 this is NaN, matching torch's CrossEntropyLoss.
    loss = totals[0] / totals[1]               # mean over non-ignored rows
    acc = totals[2] / jnp.float32(n)           # mean over ALL rows (as in torch code)
    return loss, acc


class Loss:
    """JAX/Pallas port of the PyTorch `Loss` module forward pass."""

    def __call__(self, outputs, batch):
        labels = batch['ids']
        logits = outputs[0]
        loss, acc = _ce_loss_and_acc(logits, labels)
        loss_stats = {'loss': loss, 'acc': acc}
        return loss, loss_stats


def _reference(logits, labels):
    logits = logits.astype(jnp.float32)
    lse = jax.nn.logsumexp(logits, axis=-1)
    tgt = jnp.take_along_axis(
        logits, jnp.clip(labels, 0, None)[:, None], axis=-1)[:, 0]
    valid = labels != -1
    loss = jnp.sum(jnp.where(valid, lse - tgt, 0.0)) / jnp.sum(valid)
    acc = jnp.mean((jnp.argmax(logits, -1) == labels).astype(jnp.float32))
    return loss, acc


if __name__ == "__main__":
    key = jax.random.PRNGKey(0)
    k1, k2 = jax.random.split(key)

    loss_mod = Loss()

    # Case 1: small f32 problem, exercises ignore_index=-1.
    N, C = 16, 32
    logits = jax.random.normal(k1, (N, C), dtype=jnp.float32)
    labels = jax.random.randint(k2, (N,), 0, C, dtype=jnp.int32)
    labels = labels.at[3].set(-1).at[11].set(-1)
    loss, stats = loss_mod((logits,), {'ids': labels})
    jax.block_until_ready((loss, stats['acc']))
    ref_loss, ref_acc = _reference(logits, labels)
    assert jnp.allclose(loss, ref_loss, atol=1e-4), (loss, ref_loss)
    assert jnp.allclose(stats['acc'], ref_acc, atol=1e-6), (stats['acc'], ref_acc)

    # Case 2: uneven row count exercises the tail-masking / padded-label path.
    N2 = 19
    k3, k4 = jax.random.split(k1)
    logits2 = jax.random.normal(k3, (N2, C), dtype=jnp.float32)
    labels2 = jax.random.randint(k4, (N2,), 0, C, dtype=jnp.int32).at[0].set(-1)
    loss2, stats2 = loss_mod((logits2,), {'ids': labels2})
    jax.block_until_ready((loss2, stats2['acc']))
    ref_loss2, ref_acc2 = _reference(logits2, labels2)
    assert jnp.allclose(loss2, ref_loss2, atol=1e-4), (loss2, ref_loss2)
    assert jnp.allclose(stats2['acc'], ref_acc2, atol=1e-6), (stats2['acc'], ref_acc2)

    # Case 3: bf16 logits exercise the native-dtype streaming + in-kernel upcast.
    N3, C3 = 40, 96
    k5, k6 = jax.random.split(k2)
    logits3 = jax.random.normal(k5, (N3, C3), dtype=jnp.float32).astype(jnp.bfloat16)
    labels3 = jax.random.randint(k6, (N3,), 0, C3, dtype=jnp.int32).at[5].set(-1)
    loss3, stats3 = loss_mod((logits3,), {'ids': labels3})
    jax.block_until_ready((loss3, stats3['acc']))
    ref_loss3, ref_acc3 = _reference(logits3, labels3)
    assert jnp.allclose(loss3, ref_loss3, atol=1e-3, rtol=1e-3), (loss3, ref_loss3)
    assert jnp.allclose(stats3['acc'], ref_acc3, atol=1e-6), (stats3['acc'], ref_acc3)

    print("KERNEL_OK")
</pallas_src>

<mosaic_0001>
module attributes {stable_mosaic.version = 11 : i64} {
  func.func @_loss_kernel(%arg0: i32, %arg1: i32, %arg2: memref<16x32xf32, #tpu.memory_space<vmem>>, %arg3: memref<16x1xi32, #tpu.memory_space<vmem>>, %arg4: memref<1x8x128xf32, #tpu.memory_space<vmem>>, %arg5: memref<1x8x128xf32, #tpu.memory_space<vmem>>) attributes {dimension_semantics = [#tpu.dimension_semantics<parallel>, #tpu.dimension_semantics<arbitrary>], iteration_bounds = array<i64: 1, 1>, scalar_prefetch = 0 : i64, scratch_operands = 1 : i64, tpu.core_type = #tpu.core_type<tc>, window_params = [{transform_indices = @transform_0, window_bounds = array<i64: 16, 32>}, {transform_indices = @transform_1, window_bounds = array<i64: 16, 1>}, {transform_indices = @transform_2, window_bounds = array<i64: 1, 8, 128>}]} {
    %c0_i32 = arith.constant 0 : i32
    %0 = arith.cmpi eq, %arg1, %c0_i32 : i32
    %1 = arith.extui %0 : i1 to i32
    %c0_i32_0 = arith.constant 0 : i32
    %2 = arith.cmpi ne, %1, %c0_i32_0 : i32
    scf.if %2 {
      %cst_24 = arith.constant 0.000000e+00 : f32
      %69 = vector.broadcast %cst_24 : f32 to vector<1x8x128xf32>
      %c0_25 = arith.constant 0 : index
      %c0_26 = arith.constant 0 : index
      %c0_27 = arith.constant 0 : index
      %70 = vector.load %arg5[%c0_25, %c0_26, %c0_27] : memref<1x8x128xf32, #tpu.memory_space<vmem>>, vector<1x8x128xf32>
      tpu.vector_store %arg5[%c0_25, %c0_26, %c0_27], %69 {strides = array<i32>} : memref<1x8x128xf32, #tpu.memory_space<vmem>>, vector<1x8x128xf32>,
    } else {
    }
    %c0 = arith.constant 0 : index
    %c0_1 = arith.constant 0 : index
    %3 = vector.load %arg3[%c0, %c0_1] : memref<16x1xi32, #tpu.memory_space<vmem>>, vector<16x1xi32>
    %c0_2 = arith.constant 0 : index
    %c0_3 = arith.constant 0 : index
    %4 = vector.load %arg2[%c0_2, %c0_3] : memref<16x32xf32, #tpu.memory_space<vmem>>, vector<16x32xf32>
    %5 = tpu.iota {dimensions = array<i32: 1>} : vector<16x32xi32>
    %cst = arith.constant dense<0xFF800000> : vector<16xf32>
    %6 = vector.multi_reduction <maximumf>, %4, %cst [1] : vector<16x32xf32> to vector<16xf32>
    %7 = vector.shape_cast %6 : vector<16xf32> to vector<16x1xf32>
    %8 = vector.broadcast %7 : vector<16x1xf32> to vector<16x32xf32>
    %9 = arith.cmpf oeq, %4, %8 : vector<16x32xf32>
    %10 = vector.broadcast %7 : vector<16x1xf32> to vector<16x32xf32>
    %11 = arith.subf %4, %10 : vector<16x32xf32>
    %12 = math.exp %11 : vector<16x32xf32>
    %cst_4 = arith.constant dense<0.000000e+00> : vector<16xf32>
    %13 = vector.multi_reduction <add>, %12, %cst_4 [1] : vector<16x32xf32> to vector<16xf32>
    %14 = vector.shape_cast %13 : vector<16xf32> to vector<16x1xf32>
    %15 = vector.broadcast %3 : vector<16x1xi32> to vector<16x32xi32>
    %16 = arith.cmpi eq, %5, %15 : vector<16x32xi32>
    %cst_5 = arith.constant 0.000000e+00 : f32
    %17 = vector.broadcast %cst_5 : f32 to vector<16x32xf32>
    %18 = arith.select %16, %11, %17 : vector<16x32xi1>, vector<16x32xf32>
    %cst_6 = arith.constant dense<0.000000e+00> : vector<16xf32>
    %19 = vector.multi_reduction <add>, %18, %cst_6 [1] : vector<16x32xf32> to vector<16xf32>
    %20 = vector.shape_cast %19 : vector<16xf32> to vector<16x1xf32>
    %c-1_i32 = arith.constant -1 : i32
    %21 = vector.broadcast %c-1_i32 : i32 to vector<16x1xi32>
    %22 = arith.cmpi ne, %3, %21 : vector<16x1xi32>
    %23 = math.log %14 : vector<16x1xf32>
    %24 = arith.subf %23, %20 : vector<16x1xf32>
    %cst_7 = arith.constant 0.000000e+00 : f32
    %25 = vector.broadcast %cst_7 : f32 to vector<16x1xf32>
    %26 = arith.select %22, %24, %25 : vector<16x1xi1>, vector<16x1xf32>
    %c32_i32 = arith.constant 32 : i32
    %27 = vector.broadcast %c32_i32 : i32 to vector<16x32xi32>
    %28 = arith.select %9, %5, %27 : vector<16x32xi1>, vector<16x32xi32>
    %cst_8 = arith.constant dense<2147483647> : vector<16xi32>
    %29 = vector.multi_reduction <minsi>, %28, %cst_8 [1] : vector<16x32xi32> to vector<16xi32>
    %30 = vector.shape_cast %29 : vector<16xi32> to vector<16x1xi32>
    %31 = arith.cmpi eq, %30, %3 : vector<16x1xi32>
    %32 = arith.extui %31 : vector<16x1xi1> to vector<16x1xi32>
    %33 = arith.sitofp %32 : vector<16x1xi32> to vector<16x1xf32>
    %cst_9 = arith.constant dense<0.000000e+00> : vector<1xf32>
    %34 = vector.multi_reduction <add>, %26, %cst_9 [0] : vector<16x1xf32> to vector<1xf32>
    %35 = vector.shape_cast %34 : vector<1xf32> to vector<1x1xf32>
    %36 = arith.extui %22 : vector<16x1xi1> to vector<16x1xi32>
    %37 = arith.sitofp %36 : vector<16x1xi32> to vector<16x1xf32>
    %cst_10 = arith.constant dense<0.000000e+00> : vector<1xf32>
    %38 = vector.multi_reduction <add>, %37, %cst_10 [0] : vector<16x1xf32> to vector<1xf32>
    %39 = vector.shape_cast %38 : vector<1xf32> to vector<1x1xf32>
    %cst_11 = arith.constant dense<0.000000e+00> : vector<1xf32>
    %40 = vector.multi_reduction <add>, %33, %cst_11 [0] : vector<16x1xf32> to vector<1xf32>
    %41 = vector.shape_cast %40 : vector<1xf32> to vector<1x1xf32>
    %42 = tpu.iota {dimensions = array<i32: 2>} : vector<1x8x128xi32>
    %c0_i32_12 = arith.constant 0 : i32
    %43 = vector.broadcast %c0_i32_12 : i32 to vector<1x8x128xi32>
    %44 = arith.cmpi eq, %42, %43 : vector<1x8x128xi32>
    %cst_13 = arith.constant 0.000000e+00 : f32
    %45 = vector.shape_cast %35 : vector<1x1xf32> to vector<1x1x1xf32>
    %46 = vector.broadcast %45 : vector<1x1x1xf32> to vector<1x8x128xf32>
    %47 = vector.broadcast %cst_13 : f32 to vector<1x8x128xf32>
    %48 = arith.select %44, %46, %47 : vector<1x8x128xi1>, vector<1x8x128xf32>
    %c1_i32 = arith.constant 1 : i32
    %49 = vector.broadcast %c1_i32 : i32 to vector<1x8x128xi32>
    %50 = arith.cmpi eq, %42, %49 : vector<1x8x128xi32>
    %cst_14 = arith.constant 0.000000e+00 : f32
    %51 = vector.shape_cast %39 : vector<1x1xf32> to vector<1x1x1xf32>
    %52 = vector.broadcast %51 : vector<1x1x1xf32> to vector<1x8x128xf32>
    %53 = vector.broadcast %cst_14 : f32 to vector<1x8x128xf32>
    %54 = arith.select %50, %52, %53 : vector<1x8x128xi1>, vector<1x8x128xf32>
    %55 = arith.addf %48, %54 : vector<1x8x128xf32>
    %c2_i32 = arith.constant 2 : i32
    %56 = vector.broadcast %c2_i32 : i32 to vector<1x8x128xi32>
    %57 = arith.cmpi eq, %42, %56 : vector<1x8x128xi32>
    %cst_15 = arith.constant 0.000000e+00 : f32
    %58 = vector.shape_cast %41 : vector<1x1xf32> to vector<1x1x1xf32>
    %59 = vector.broadcast %58 : vector<1x1x1xf32> to vector<1x8x128xf32>
    %60 = vector.broadcast %cst_15 : f32 to vector<1x8x128xf32>
    %61 = arith.select %57, %59, %60 : vector<1x8x128xi1>, vector<1x8x128xf32>
    %62 = arith.addf %55, %61 : vector<1x8x128xf32>
    %c0_16 = arith.constant 0 : index
    %c0_17 = arith.constant 0 : index
    %c0_18 = arith.constant 0 : index
    %63 = vector.load %arg5[%c0_16, %c0_17, %c0_18] : memref<1x8x128xf32, #tpu.memory_space<vmem>>, vector<1x8x128xf32>
    %64 = arith.addf %63, %62 : vector<1x8x128xf32>
    %c0_19 = arith.constant 0 : index
    %c0_20 = arith.constant 0 : index
    %c0_21 = arith.constant 0 : index
    %65 = vector.load %arg5[%c0_19, %c0_20, %c0_21] : memref<1x8x128xf32, #tpu.memory_space<vmem>>, vector<1x8x128xf32>
    tpu.vector_store %arg5[%c0_19, %c0_20, %c0_21], %64 {strides = array<i32>} : memref<1x8x128xf32, #tpu.memory_space<vmem>>, vector<1x8x128xf32>,
    %c0_i32_22 = arith.constant 0 : i32
    %66 = arith.cmpi eq, %arg1, %c0_i32_22 : i32
    %67 = arith.extui %66 : i1 to i32
    %c0_i32_23 = arith.constant 0 : i32
    %68 = arith.cmpi ne, %67, %c0_i32_23 : i32
    scf.if %68 {
      %c0_24 = arith.constant 0 : index
      %c0_25 = arith.constant 0 : index
      %c0_26 = arith.constant 0 : index
      %69 = vector.load %arg5[%c0_24, %c0_25, %c0_26] : memref<1x8x128xf32, #tpu.memory_space<vmem>>, vector<1x8x128xf32>
      %c0_27 = arith.constant 0 : index
      %c0_28 = arith.constant 0 : index
      %c0_29 = arith.constant 0 : index
      %70 = vector.load %arg4[%c0_27, %c0_28, %c0_29] : memref<1x8x128xf32, #tpu.memory_space<vmem>>, vector<1x8x128xf32>
      tpu.vector_store %arg4[%c0_27, %c0_28, %c0_29], %69 {strides = array<i32>} : memref<1x8x128xf32, #tpu.memory_space<vmem>>, vector<1x8x128xf32>,
    } else {
    }
    return
  }
  func.func @transform_0(%arg0: i32, %arg1: i32) -> (i32, i32) {
    %c1_i32 = arith.constant 1 : i32
    %0 = arith.muli %arg0, %c1_i32 : i32
    %1 = arith.addi %0, %arg1 : i32
    %c0_i32 = arith.constant 0 : i32
    %2 = arith.minsi %1, %c0_i32 : i32
    %c0_i32_0 = arith.constant 0 : i32
    %c0_i32_1 = arith.constant 0 : i32
    return %2, %c0_i32_0 : i32, i32
  }
  func.func @transform_1(%arg0: i32, %arg1: i32) -> (i32, i32) {
    %c1_i32 = arith.constant 1 : i32
    %0 = arith.muli %arg0, %c1_i32 : i32
    %1 = arith.addi %0, %arg1 : i32
    %c0_i32 = arith.constant 0 : i32
    %c0_i32_0 = arith.constant 0 : i32
    return %1, %c0_i32 : i32, i32
  }
  func.func @transform_2(%arg0: i32, %arg1: i32) -> (i32, i32, i32) {
    %c0_i32 = arith.constant 0 : i32
    %c0_i32_0 = arith.constant 0 : i32
    %c0_i32_1 = arith.constant 0 : i32
    return %arg0, %c0_i32, %c0_i32_0 : i32, i32, i32
  }
}

</mosaic_0001>

<llo_original>
// kernel: tpu_custom_call.1
$region0: #{tpu_custom_call.1}
  #allocation0 [shape = 'u32[]', space=smem, size = 0x4, offset = 0x4, fixed_abs, tag = 'smem constant byte address 0x4 - core index']
  #allocation1 [shape = 'u32[144,128]{1,0:T(1,128)}', space=vmem, size = 0x12000, scoped, tag = 'internal scratch']
  #allocation2 [shape = 'f32[1,8,128]{2,1,0:T(8,128)}', space=vmem, size = 0x1000, scoped, tag = 'scratch operand']
  %s0 = inlined_call_operand.vmem [shape: f32[16,32], index: 0, kind: input, shape index: {}]
  %s1 = inlined_call_operand.vmem [shape: s32[16,1], index: 1, kind: input, shape index: {}]
  %s2 = inlined_call_operand.hbm [shape: f32[1,8,128], index: 2, kind: output, shape index: {}]
  %s3 = sld [smem:[#allocation0]]
  $region26: #{tpu_custom_call.1} parent=0
    _
  %s5 = ssub.s32 1, %s3
  %s6 = scalar_select 0, %s5, %s3
  $region1: #{tpu_custom_call.1} parent=0
    #allocation3 [shape = 'u8[4096]{0}', space=vmem, size = 0x1000, scoped, tag = 'output window, operand 0, single buffered']
    #allocation4 [shape = 's32[1]{0}', space=sflag, size = 0x4, scoped, tag = 'scoped memory for tpu_custom_call.1']
    %7 = vsyncpa [#allocation4], 0
    // Predicated region
    $region2: #{tpu_custom_call.1} parent=1 // pred_check
      _
    $region3: #{tpu_custom_call.1} parent=1 // pred_check_branch
      %9 = sbr.rel (0) target = $region5
    $region4: #{tpu_custom_call.1} parent=1 // pred_region
      %s10 = sadd.s32 0, 0
      %p11 = scmp.lt.s32.totalorder %s10, 0
      %s12 = scalar_select %p11, %s10, 0
      %s13 = smul.u32 2, %s12
      %p14 = scmp.lt.s32.totalorder %s13, 1
      %s15 = scalar_select %p14, %s13, 1
      %s16 = smul.addr %s15, 8
      %s17 = scalar_lea.vmem %s0, %s16
      %s18 = sadd.s32 0, 0
      %p19 = scmp.lt.s32.totalorder %s18, 0
      %s20 = scalar_select %p19, %s18, 0
      %s21 = smul.u32 2, %s20
    $region5: #{tpu_custom_call.1} parent=1 // pred_fallthru
      _
    // Predicated region
    $region6: #{tpu_custom_call.1} parent=1 // pred_check
      _
    $region7: #{tpu_custom_call.1} parent=1 // pred_check_branch
      %23 = sbr.rel (0) target = $region9
    $region8: #{tpu_custom_call.1} parent=1 // pred_region
      %s24 = sadd.s32 0, 0
      %s25 = smul.u32 2, %s24
      %p26 = scmp.lt.s32.totalorder %s25, 1
      %s27 = scalar_select %p26, %s25, 1
      %s28 = smul.addr %s27, 8
      %s29 = scalar_lea.vmem %s1, %s28
      %s30 = sadd.s32 0, 0
      %s31 = smul.u32 2, %s30
    $region9: #{tpu_custom_call.1} parent=1 // pred_fallthru
      _
    %s32 = sadd.s32 0, 0
    %p33 = scmp.lt.s32.totalorder %s32, 0
    %s34 = scalar_select %p33, %s32, 0
    %s35 = smul.u32 2, %s34
    %p36 = scmp.lt.s32.totalorder %s35, 1
    %s37 = scalar_select %p36, %s35, 1
    %s38 = smul.addr %s37, 8
    %s39 = scalar_lea.vmem %s0, %s38
    %s40 = sadd.s32 0, 0
    %s41 = smul.u32 2, %s40
    %p42 = scmp.lt.s32.totalorder %s41, 1
    %s43 = scalar_select %p42, %s41, 1
    %s44 = smul.addr %s43, 8
    %s45 = scalar_lea.vmem %s1, %s44
    %s46 = sadd.s32 0, 0
    %p47 = scmp.lt.s32.totalorder %s46, 0
    %s48 = scalar_select %p47, %s46, 0
    %s49 = smul.u32 2, %s48
    %p50 = scmp.lt.s32.totalorder %s49, 1
    %s51 = scalar_select %p50, %s49, 1
    %s52 = smul.addr %s51, 8
    %s53 = scalar_lea.vmem %s0, %s52
    %s54 = sadd.s32 0, 0
    %p55 = scmp.lt.s32.totalorder %s54, 0
    %s56 = scalar_select %p55, %s54, 0
    %s57 = smul.u32 2, %s56
    %s58 = sadd.s32 0, 0
    %s59 = smul.u32 2, %s58
    %p60 = scmp.lt.s32.totalorder %s59, 1
    %s61 = scalar_select %p60, %s59, 1
    %s62 = smul.addr %s61, 8
    %s63 = scalar_lea.vmem %s1, %s62
    %s64 = sadd.s32 0, 0
    %s65 = smul.u32 2, %s64
    %p66 = scmp.eq.s32.totalorder 0, 0
    // Predicated region
    $region10: #{tpu_custom_call.1} parent=1 // pred_check
      %p67 = pneg %p66
    $region11: #{tpu_custom_call.1} parent=1 // pred_check_branch
      %69 = sbr.rel (%p67) target = $region13
    $region12: #{tpu_custom_call.1} parent=1 // pred_region
      %70 = vst [vmem:[#allocation2] sm:$0xff] 0.0
    $region13: #{tpu_custom_call.1} parent=1 // pred_fallthru
      _
    %v71 = vld [vmem:[%s63] sm:$0xff]
    %v72 = vld [vmem:[%s63 + $0x8] sm:$0xff]
    %v73 = vld [vmem:[%s53] sm:$0xff]
    %v74 = vld [vmem:[%s53 + $0x8] sm:$0xff]
    %v75 = vlaneseq
    %v76 = vand.u32 %v75, 127
    %vm77 = vcmask 261120
    %v78 = vsel %vm77, %v73, -inf
    %79 = vmax.xlane.f32.xlu0 %v78
    %v80 = vpop.xlane.xlu0 %79
    %v81 = vsel %vm77, %v74, -inf
    %82 = vmax.xlane.f32.xlu0 %v81
    %v83 = vpop.xlane.xlu0 %82
    %vm84 = vcmp.eq.f32.partialorder %v73, %v80
    %vm85 = vcmp.eq.f32.partialorder %v74, %v83
    %v86 = vsub.f32 %v73, %v80
    %v87 = vsub.f32 %v74, %v83
    %v88 = vmul.f32 %v86, 1.442695
    %v89 = vpow.pop %v88
    %v90 = vmul.f32 %v87, 1.442695
    %v91 = vpow.pop %v90
    %v92 = vsel %vm77, %v89, 0.0
    %93 = vadd.xlane.f32.xlu0 %v92
    %v94 = vpop.xlane.xlu0 %93
    %v95 = vsel %vm77, %v91, 0.0
    %96 = vadd.xlane.f32.xlu0 %v95
    %v97 = vpop.xlane.xlu0 %96
    %98 = vset.pattern.permute.xlu0 0
    %99 = vperm.xlu0 %98, %v71
    %v100 = vpop.permute.xlu0 %99
    %101 = vset.pattern.permute.xlu0 0
    %102 = vperm.xlu0 %101, %v72
    %v103 = vpop.permute.xlu0 %102
    %vm104 = vcmp.eq.s32.totalorder %v76, %v100
    %vm105 = vcmp.eq.s32.totalorder %v76, %v103
    %v106 = vsel %vm104, %v86, 0.0
    %v107 = vsel %vm105, %v87, 0.0
    %v108 = vsel %vm77, %v106, 0.0
    %109 = vadd.xlane.f32.xlu0 %v108
    %v110 = vpop.xlane.xlu0 %109
    %v111 = vsel %vm77, %v107, 0.0
    %112 = vadd.xlane.f32.xlu0 %v111
    %v113 = vpop.xlane.xlu0 %112
    %vm114 = vcmp.ne.s32.totalorder %v71, 4294967295
    %vm115 = vcmp.ne.s32.totalorder %v72, 4294967295
    %v116 = vlog2.pop %v94
    %v117 = vmul.f32 %v116, 0.6931472
    %v118 = vlog2.pop %v97
    %v119 = vmul.f32 %v118, 0.6931472
    %v120 = vsub.f32 %v117, %v110
    %v121 = vsub.f32 %v119, %v113
    %v122 = vsel %vm114, %v120, 0.0
    %v123 = vsel %vm115, %v121, 0.0
    %v124 = vsel %vm84, %v76, 32
    %v125 = vsel %vm85, %v76, 32
    %v126 = vsel %vm77, %v124, 2147483647
    %v127 = vand.u32 %v126, 65535
    %v128 = vshra.s32 %v126, 16
    %v129 = vcvt.s32.f32 %v127
    %v130 = vcvt.s32.f32 %v128
    %131 = vmin.xlane.f32.xlu0 %v130
    %v132 = vpop.xlane.xlu0 %131
    %vm133 = vcmp.eq.f32.partialorder %v130, %v132
    %v134 = vsel %vm133, %v129, inf
    %135 = vmin.xlane.f32.xlu0 %v134
    %v136 = vpop.xlane.xlu0 %135
    %v137 = vcvt.f32.s32 %v136
    %v138 = vcvt.f32.s32 %v132
    %v139 = vshll.u32 %v138, 16
    %v140 = vadd.s32 %v139, %v137
    %v141 = vsel %vm77, %v125, 2147483647
    %v142 = vand.u32 %v141, 65535
    %v143 = vshra.s32 %v141, 16
    %v144 = vcvt.s32.f32 %v142
    %v145 = vcvt.s32.f32 %v143
    %146 = vmin.xlane.f32.xlu0 %v145
    %v147 = vpop.xlane.xlu0 %146
    %vm148 = vcmp.eq.f32.partialorder %v145, %v147
    %v149 = vsel %vm148, %v144, inf
    %150 = vmin.xlane.f32.xlu0 %v149
    %v151 = vpop.xlane.xlu0 %150
    %v152 = vcvt.f32.s32 %v151
    %v153 = vcvt.f32.s32 %v147
    %v154 = vshll.u32 %v153, 16
    %v155 = vadd.s32 %v154, %v152
    %vm156 = vcmp.eq.s32.totalorder %v140, %v71
    %vm157 = vcmp.eq.s32.totalorder %v155, %v72
    %v158 = vsel %vm156, 1, 0
    %v159 = vsel %vm157, 1, 0
    %v160 = vcvt.s32.f32 %v158
    %v161 = vcvt.s32.f32 %v159
    %vm162 = vcmask 7168
    %v163 = vsel %vm162, %v122, 0.0
    %v164 = vsel %vm162, %v123, 0.0
    %v165 = vadd.f32 %v163, %v164
    %v166 = vrot.slane %v165, 4
    %v167 = vadd.f32 %v165, %v166
    %v168 = vrot.slane %v167, 2
    %v169 = vadd.f32 %v167, %v168
    %v170 = vrot.slane %v169, 1
    %v171 = vadd.f32 %v169, %v170
    %v172 = vsel %vm114, 1, 0
    %v173 = vsel %vm115, 1, 0
    %v174 = vcvt.s32.f32 %v172
    %v175 = vcvt.s32.f32 %v173
    %v176 = vsel %vm162, %v174, 0.0
    %v177 = vsel %vm162, %v175, 0.0
    %v178 = vadd.f32 %v176, %v177
    %v179 = vrot.slane %v178, 4
    %v180 = vadd.f32 %v178, %v179
    %v181 = vrot.slane %v180, 2
    %v182 = vadd.f32 %v180, %v181
    %v183 = vrot.slane %v182, 1
    %v184 = vadd.f32 %v182, %v183
    %v185 = vsel %vm162, %v160, 0.0
    %v186 = vsel %vm162, %v161, 0.0
    %v187 = vadd.f32 %v185, %v186
    %v188 = vrot.slane %v187, 4
    %v189 = vadd.f32 %v187, %v188
    %v190 = vrot.slane %v189, 2
    %v191 = vadd.f32 %v189, %v190
    %v192 = vrot.slane %v191, 1
    %v193 = vadd.f32 %v191, %v192
    %vm194 = vcmp.eq.s32.totalorder %v76, 0
    %196 = vset.pattern.permute.xlu0 0
    %197 = vperm.xlu0 %196, %v171
    %v198 = vpop.permute.xlu0 %197
    %v200 = vsel %vm194, %v198, 0.0
    %vm201 = vcmp.eq.s32.totalorder %v76, 1
    %203 = vset.pattern.permute.xlu0 0
    %204 = vperm.xlu0 %203, %v184
    %v205 = vpop.permute.xlu0 %204
    %v207 = vsel %vm201, %v205, 0.0
    %v208 = vadd.f32 %v200, %v207
    %vm209 = vcmp.eq.s32.totalorder %v76, 2
    %211 = vset.pattern.permute.xlu0 0
    %212 = vperm.xlu0 %211, %v193
    %v213 = vpop.permute.xlu0 %212
    %v215 = vsel %vm209, %v213, 0.0
    %v216 = vadd.f32 %v208, %v215
    %v217 = vld [vmem:[#allocation2] sm:$0xff]
    %v218 = vadd.f32 %v217, %v216
    %219 = vst [vmem:[#allocation2] sm:$0xff] %v218
    // Predicated region
    $region14: #{tpu_custom_call.1} parent=1 // pred_check
      %p220 = pneg %p66
    $region15: #{tpu_custom_call.1} parent=1 // pred_check_branch
      %222 = sbr.rel (%p220) target = $region17
    $region16: #{tpu_custom_call.1} parent=1 // pred_region
      %v223 = vld [vmem:[#allocation2] sm:$0xff]
      %224 = vst [vmem:[#allocation3] sm:$0xff] %v223
    $region17: #{tpu_custom_call.1} parent=1 // pred_fallthru
      _
    // Predicated region
    $region18: #{tpu_custom_call.1} parent=1 // pred_check
      _
    $region19: #{tpu_custom_call.1} parent=1 // pred_check_branch
      %226 = sbr.rel (0) target = $region21
    $region20: #{tpu_custom_call.1} parent=1 // pred_region
      %s228 = ssub.s32 128, 128
      %229 = vsyncadd [#allocation4], %s228
      %s231 = sshll.u32 [#allocation3], 4
      %s232 = int_to_ptr.vmem [resolvable:$true] %s231
      %234 = dma.vmem_to_hbm [thread:$0]  %s232, 128, %s2, [#allocation4]
    $region21: #{tpu_custom_call.1} parent=1 // pred_fallthru
      _
    // Predicated region
    $region22: #{tpu_custom_call.1} parent=1 // pred_check
      _
    $region23: #{tpu_custom_call.1} parent=1 // pred_check_branch
      %236 = sbr.rel (0) target = $region25
    $region24: #{tpu_custom_call.1} parent=1 // pred_region
      %237 = dma.done [#allocation4], 128
    $region25: #{tpu_custom_call.1} parent=1 // pred_fallthru
      _
    %238 = vsyncpa [#allocation4], 1

</llo_original>
